<compile_context>
chip_gen: v6e
topology: v6e:2x2x1
jax: 0.10.0
libtpu: 0.0.40
codegen_flags: <defaults>
</compile_context>

<pallas_src>
import jax
import jax.numpy as jnp
from jax.experimental import pallas as pl
from jax.experimental.pallas import tpu as pltpu


def _round_up(n, m):
    return ((n + m - 1) // m) * m


def _mlp_kernel(x_ref,
                w1_ref, b1_ref,
                w2_ref, b2_ref,
                w3_ref, b3_ref,
                w4_ref, b4_ref,
                w5_ref, b5_ref,
                o_ref):
    # One (TB, dim) batch tile. All 5 matmuls + ReLUs fused; f32 accumulate.
    def dense(h, w_ref, b_ref):
        return jnp.dot(h.astype(jnp.bfloat16),
                       w_ref[...].astype(jnp.bfloat16),
                       preferred_element_type=jnp.float32) + b_ref[...]

    h = x_ref[...]                                   # f32 (TB, dim)
    h = jnp.maximum(dense(h, w1_ref, b1_ref), 0.0)
    h = jnp.maximum(dense(h, w2_ref, b2_ref), 0.0)
    h = jnp.maximum(dense(h, w3_ref, b3_ref), 0.0)
    h = jnp.maximum(dense(h, w4_ref, b4_ref), 0.0)
    o_ref[...] = dense(h, w5_ref, b5_ref).astype(o_ref.dtype)


def fc_4x30_forward(x, params, *, tb=2048):
    """x: any shape reshapeable to (-1, dim). params: dict of W (in,out) / b (1,out)."""
    dim = params["w1"].shape[0]
    x2d = x.reshape(-1, dim).astype(jnp.float32)
    B = x2d.shape[0]

    # Tile rows: multiple of 8 (sublane), capped at `tb` (~256 KiB f32 per
    # buffer at dim=32 -> trivially double-buffered on every TPU generation).
    TB = min(tb, _round_up(B, 8))
    Bp = _round_up(B, TB)
    if Bp != B:
        x2d = jnp.pad(x2d, ((0, Bp - B), (0, 0)))

    grid = (Bp // TB,)

    def resident_spec(arr):
        # Whole-array block, constant index map -> fetched once, stays in VMEM.
        return pl.BlockSpec(arr.shape, lambda i: (0, 0))

    in_specs = [pl.BlockSpec((TB, dim), lambda i: (i, 0))]
    args = [x2d]
    for l in range(1, 6):
        w, b = params[f"w{l}"], params[f"b{l}"]
        in_specs += [resident_spec(w), resident_spec(b)]
        args += [w, b]

    out = pl.pallas_call(
        _mlp_kernel,
        out_shape=jax.ShapeDtypeStruct((Bp, 2), jnp.float32),
        grid=grid,
        in_specs=in_specs,
        out_specs=pl.BlockSpec((TB, 2), lambda i: (i, 0)),
        compiler_params=pltpu.CompilerParams(
            dimension_semantics=("parallel",),
            vmem_limit_bytes=32 * 1024 * 1024,
        ),
    )(*args)

    return out[:B]


def init_params(dim, key):
    """Deterministic init mimicking PyTorch nn.Linear default (uniform ±1/sqrt(fan_in)).
    Weights stored as (in_features, out_features): y = x @ W + b."""
    sizes = [(dim, 30), (30, 30), (30, 30), (30, 30), (30, 2)]
    params = {}
    keys = jax.random.split(key, 2 * len(sizes))
    for i, (fan_in, fan_out) in enumerate(sizes):
        bound = 1.0 / jnp.sqrt(float(fan_in))
        w = jax.random.uniform(keys[2 * i], (fan_in, fan_out), jnp.float32,
                               minval=-bound, maxval=bound)
        b = jax.random.uniform(keys[2 * i + 1], (1, fan_out), jnp.float32,
                               minval=-bound, maxval=bound)
        params[f"w{i + 1}"] = w
        params[f"b{i + 1}"] = b
    return params


def reference_forward(x, params):
    dim = params["w1"].shape[0]
    h = x.reshape(-1, dim).astype(jnp.float32)
    h = jnp.maximum(h @ params["w1"] + params["b1"], 0.0)
    h = jnp.maximum(h @ params["w2"] + params["b2"], 0.0)
    h = jnp.maximum(h @ params["w3"] + params["b3"], 0.0)
    h = jnp.maximum(h @ params["w4"] + params["b4"], 0.0)
    return h @ params["w5"] + params["b5"]


if __name__ == "__main__":
    key = jax.random.PRNGKey(0)
    k_x, k_x2, k_p = jax.random.split(key, 3)

    dim = 32
    params = init_params(dim, k_p)

    # Case 1: 3-D input exercising the flatten (8, 4, 8) -> (8, 32).
    x = jax.random.normal(k_x, (8, 4, 8), jnp.float32)
    out = jax.block_until_ready(fc_4x30_forward(x, params))
    ref = reference_forward(x, params)
    assert out.shape == (8, 2)
    # bf16 matmul operands (f32 accumulate) -> compare with relaxed tolerance.
    assert jnp.allclose(out, ref, atol=2e-2, rtol=2e-2), \
        f"max abs err {jnp.max(jnp.abs(out - ref))}"

    # Case 2: ragged batch (20 rows, not a multiple of the 8-row sublane tile)
    # to exercise the padding / slice path.
    x2 = jax.random.normal(k_x2, (20, dim), jnp.float32)
    out2 = jax.block_until_ready(fc_4x30_forward(x2, params))
    ref2 = reference_forward(x2, params)
    assert out2.shape == (20, 2)
    assert jnp.allclose(out2, ref2, atol=2e-2, rtol=2e-2), \
        f"max abs err {jnp.max(jnp.abs(out2 - ref2))}"

    print("KERNEL_OK")
</pallas_src>

<mosaic_0001>
module attributes {stable_mosaic.version = 11 : i64} {
  func.func @_mlp_kernel(%arg0: i32, %arg1: memref<8x32xf32, #tpu.memory_space<vmem>>, %arg2: memref<32x30xf32, #tpu.memory_space<vmem>>, %arg3: memref<1x30xf32, #tpu.memory_space<vmem>>, %arg4: memref<30x30xf32, #tpu.memory_space<vmem>>, %arg5: memref<1x30xf32, #tpu.memory_space<vmem>>, %arg6: memref<30x30xf32, #tpu.memory_space<vmem>>, %arg7: memref<1x30xf32, #tpu.memory_space<vmem>>, %arg8: memref<30x30xf32, #tpu.memory_space<vmem>>, %arg9: memref<1x30xf32, #tpu.memory_space<vmem>>, %arg10: memref<30x2xf32, #tpu.memory_space<vmem>>, %arg11: memref<1x2xf32, #tpu.memory_space<vmem>>, %arg12: memref<8x2xf32, #tpu.memory_space<vmem>>) attributes {dimension_semantics = [#tpu.dimension_semantics<parallel>], iteration_bounds = array<i64: 1>, scalar_prefetch = 0 : i64, scratch_operands = 0 : i64, tpu.core_type = #tpu.core_type<tc>, window_params = [{transform_indices = @transform_0, window_bounds = array<i64: 8, 32>}, {pipeline_mode = #tpu.pipeline_mode<synchronous>, transform_indices = @transform_1, window_bounds = array<i64: 32, 30>}, {pipeline_mode = #tpu.pipeline_mode<synchronous>, transform_indices = @transform_2, window_bounds = array<i64: 1, 30>}, {pipeline_mode = #tpu.pipeline_mode<synchronous>, transform_indices = @transform_3, window_bounds = array<i64: 30, 30>}, {pipeline_mode = #tpu.pipeline_mode<synchronous>, transform_indices = @transform_4, window_bounds = array<i64: 1, 30>}, {pipeline_mode = #tpu.pipeline_mode<synchronous>, transform_indices = @transform_5, window_bounds = array<i64: 30, 30>}, {pipeline_mode = #tpu.pipeline_mode<synchronous>, transform_indices = @transform_6, window_bounds = array<i64: 1, 30>}, {pipeline_mode = #tpu.pipeline_mode<synchronous>, transform_indices = @transform_7, window_bounds = array<i64: 30, 30>}, {pipeline_mode = #tpu.pipeline_mode<synchronous>, transform_indices = @transform_8, window_bounds = array<i64: 1, 30>}, {pipeline_mode = #tpu.pipeline_mode<synchronous>, transform_indices = @transform_9, window_bounds = array<i64: 30, 2>}, {pipeline_mode = #tpu.pipeline_mode<synchronous>, transform_indices = @transform_10, window_bounds = array<i64: 1, 2>}, {transform_indices = @transform_11, window_bounds = array<i64: 8, 2>}]} {
    %c0 = arith.constant 0 : index
    %c0_0 = arith.constant 0 : index
    %0 = vector.load %arg1[%c0, %c0_0] : memref<8x32xf32, #tpu.memory_space<vmem>>, vector<8x32xf32>
    %1 = arith.truncf %0 : vector<8x32xf32> to vector<8x32xbf16>
    %c0_1 = arith.constant 0 : index
    %c0_2 = arith.constant 0 : index
    %2 = vector.load %arg2[%c0_1, %c0_2] : memref<32x30xf32, #tpu.memory_space<vmem>>, vector<32x30xf32>
    %3 = arith.truncf %2 : vector<32x30xf32> to vector<32x30xbf16>
    %cst = arith.constant dense<0.000000e+00> : vector<8x30xf32>
    %4 = tpu.matmul %1, %3, %cst {dimension_numbers = #tpu.dot_dimension_numbers<[1], [0], [0], [1], [0, 0, 1, 1], [], []>} : vector<8x32xbf16>, vector<32x30xbf16>, vector<8x30xf32> -> vector<8x30xf32>
    %c0_3 = arith.constant 0 : index
    %c0_4 = arith.constant 0 : index
    %5 = vector.load %arg3[%c0_3, %c0_4] : memref<1x30xf32, #tpu.memory_space<vmem>>, vector<1x30xf32>
    %6 = vector.broadcast %5 : vector<1x30xf32> to vector<8x30xf32>
    %7 = arith.addf %4, %6 : vector<8x30xf32>
    %cst_5 = arith.constant 0.000000e+00 : f32
    %8 = vector.broadcast %cst_5 : f32 to vector<8x30xf32>
    %9 = arith.maximumf %7, %8 : vector<8x30xf32>
    %10 = arith.truncf %9 : vector<8x30xf32> to vector<8x30xbf16>
    %c0_6 = arith.constant 0 : index
    %c0_7 = arith.constant 0 : index
    %11 = vector.load %arg4[%c0_6, %c0_7] : memref<30x30xf32, #tpu.memory_space<vmem>>, vector<30x30xf32>
    %12 = arith.truncf %11 : vector<30x30xf32> to vector<30x30xbf16>
    %cst_8 = arith.constant dense<0.000000e+00> : vector<8x30xf32>
    %13 = tpu.matmul %10, %12, %cst_8 {dimension_numbers = #tpu.dot_dimension_numbers<[1], [0], [0], [1], [0, 0, 1, 1], [], []>} : vector<8x30xbf16>, vector<30x30xbf16>, vector<8x30xf32> -> vector<8x30xf32>
    %c0_9 = arith.constant 0 : index
    %c0_10 = arith.constant 0 : index
    %14 = vector.load %arg5[%c0_9, %c0_10] : memref<1x30xf32, #tpu.memory_space<vmem>>, vector<1x30xf32>
    %15 = vector.broadcast %14 : vector<1x30xf32> to vector<8x30xf32>
    %16 = arith.addf %13, %15 : vector<8x30xf32>
    %cst_11 = arith.constant 0.000000e+00 : f32
    %17 = vector.broadcast %cst_11 : f32 to vector<8x30xf32>
    %18 = arith.maximumf %16, %17 : vector<8x30xf32>
    %19 = arith.truncf %18 : vector<8x30xf32> to vector<8x30xbf16>
    %c0_12 = arith.constant 0 : index
    %c0_13 = arith.constant 0 : index
    %20 = vector.load %arg6[%c0_12, %c0_13] : memref<30x30xf32, #tpu.memory_space<vmem>>, vector<30x30xf32>
    %21 = arith.truncf %20 : vector<30x30xf32> to vector<30x30xbf16>
    %cst_14 = arith.constant dense<0.000000e+00> : vector<8x30xf32>
    %22 = tpu.matmul %19, %21, %cst_14 {dimension_numbers = #tpu.dot_dimension_numbers<[1], [0], [0], [1], [0, 0, 1, 1], [], []>} : vector<8x30xbf16>, vector<30x30xbf16>, vector<8x30xf32> -> vector<8x30xf32>
    %c0_15 = arith.constant 0 : index
    %c0_16 = arith.constant 0 : index
    %23 = vector.load %arg7[%c0_15, %c0_16] : memref<1x30xf32, #tpu.memory_space<vmem>>, vector<1x30xf32>
    %24 = vector.broadcast %23 : vector<1x30xf32> to vector<8x30xf32>
    %25 = arith.addf %22, %24 : vector<8x30xf32>
    %cst_17 = arith.constant 0.000000e+00 : f32
    %26 = vector.broadcast %cst_17 : f32 to vector<8x30xf32>
    %27 = arith.maximumf %25, %26 : vector<8x30xf32>
    %28 = arith.truncf %27 : vector<8x30xf32> to vector<8x30xbf16>
    %c0_18 = arith.constant 0 : index
    %c0_19 = arith.constant 0 : index
    %29 = vector.load %arg8[%c0_18, %c0_19] : memref<30x30xf32, #tpu.memory_space<vmem>>, vector<30x30xf32>
    %30 = arith.truncf %29 : vector<30x30xf32> to vector<30x30xbf16>
    %cst_20 = arith.constant dense<0.000000e+00> : vector<8x30xf32>
    %31 = tpu.matmul %28, %30, %cst_20 {dimension_numbers = #tpu.dot_dimension_numbers<[1], [0], [0], [1], [0, 0, 1, 1], [], []>} : vector<8x30xbf16>, vector<30x30xbf16>, vector<8x30xf32> -> vector<8x30xf32>
    %c0_21 = arith.constant 0 : index
    %c0_22 = arith.constant 0 : index
    %32 = vector.load %arg9[%c0_21, %c0_22] : memref<1x30xf32, #tpu.memory_space<vmem>>, vector<1x30xf32>
    %33 = vector.broadcast %32 : vector<1x30xf32> to vector<8x30xf32>
    %34 = arith.addf %31, %33 : vector<8x30xf32>
    %cst_23 = arith.constant 0.000000e+00 : f32
    %35 = vector.broadcast %cst_23 : f32 to vector<8x30xf32>
    %36 = arith.maximumf %34, %35 : vector<8x30xf32>
    %37 = arith.truncf %36 : vector<8x30xf32> to vector<8x30xbf16>
    %c0_24 = arith.constant 0 : index
    %c0_25 = arith.constant 0 : index
    %38 = vector.load %arg10[%c0_24, %c0_25] : memref<30x2xf32, #tpu.memory_space<vmem>>, vector<30x2xf32>
    %39 = arith.truncf %38 : vector<30x2xf32> to vector<30x2xbf16>
    %cst_26 = arith.constant dense<0.000000e+00> : vector<8x2xf32>
    %40 = tpu.matmul %37, %39, %cst_26 {dimension_numbers = #tpu.dot_dimension_numbers<[1], [0], [0], [1], [0, 0, 1, 1], [], []>} : vector<8x30xbf16>, vector<30x2xbf16>, vector<8x2xf32> -> vector<8x2xf32>
    %c0_27 = arith.constant 0 : index
    %c0_28 = arith.constant 0 : index
    %41 = vector.load %arg11[%c0_27, %c0_28] : memref<1x2xf32, #tpu.memory_space<vmem>>, vector<1x2xf32>
    %42 = vector.broadcast %41 : vector<1x2xf32> to vector<8x2xf32>
    %43 = arith.addf %40, %42 : vector<8x2xf32>
    %c0_29 = arith.constant 0 : index
    %c0_30 = arith.constant 0 : index
    %44 = vector.load %arg12[%c0_29, %c0_30] : memref<8x2xf32, #tpu.memory_space<vmem>>, vector<8x2xf32>
    tpu.vector_store %arg12[%c0_29, %c0_30], %43 {strides = array<i32>} : memref<8x2xf32, #tpu.memory_space<vmem>>, vector<8x2xf32>,
    return
  }
  func.func @transform_0(%arg0: i32) -> (i32, i32) {
    %c0_i32 = arith.constant 0 : i32
    %c0_i32_0 = arith.constant 0 : i32
    return %arg0, %c0_i32 : i32, i32
  }
  func.func @transform_1(%arg0: i32) -> (i32, i32) {
    %c0_i32 = arith.constant 0 : i32
    %c0_i32_0 = arith.constant 0 : i32
    %c0_i32_1 = arith.constant 0 : i32
    return %c0_i32, %c0_i32_0 : i32, i32
  }
  func.func @transform_2(%arg0: i32) -> (i32, i32) {
    %c0_i32 = arith.constant 0 : i32
    %c0_i32_0 = arith.constant 0 : i32
    %c0_i32_1 = arith.constant 0 : i32
    return %c0_i32, %c0_i32_0 : i32, i32
  }
  func.func @transform_3(%arg0: i32) -> (i32, i32) {
    %c0_i32 = arith.constant 0 : i32
    %c0_i32_0 = arith.constant 0 : i32
    %c0_i32_1 = arith.constant 0 : i32
    return %c0_i32, %c0_i32_0 : i32, i32
  }
  func.func @transform_4(%arg0: i32) -> (i32, i32) {
    %c0_i32 = arith.constant 0 : i32
    %c0_i32_0 = arith.constant 0 : i32
    %c0_i32_1 = arith.constant 0 : i32
    return %c0_i32, %c0_i32_0 : i32, i32
  }
  func.func @transform_5(%arg0: i32) -> (i32, i32) {
    %c0_i32 = arith.constant 0 : i32
    %c0_i32_0 = arith.constant 0 : i32
    %c0_i32_1 = arith.constant 0 : i32
    return %c0_i32, %c0_i32_0 : i32, i32
  }
  func.func @transform_6(%arg0: i32) -> (i32, i32) {
    %c0_i32 = arith.constant 0 : i32
    %c0_i32_0 = arith.constant 0 : i32
    %c0_i32_1 = arith.constant 0 : i32
    return %c0_i32, %c0_i32_0 : i32, i32
  }
  func.func @transform_7(%arg0: i32) -> (i32, i32) {
    %c0_i32 = arith.constant 0 : i32
    %c0_i32_0 = arith.constant 0 : i32
    %c0_i32_1 = arith.constant 0 : i32
    return %c0_i32, %c0_i32_0 : i32, i32
  }
  func.func @transform_8(%arg0: i32) -> (i32, i32) {
    %c0_i32 = arith.constant 0 : i32
    %c0_i32_0 = arith.constant 0 : i32
    %c0_i32_1 = arith.constant 0 : i32
    return %c0_i32, %c0_i32_0 : i32, i32
  }
  func.func @transform_9(%arg0: i32) -> (i32, i32) {
    %c0_i32 = arith.constant 0 : i32
    %c0_i32_0 = arith.constant 0 : i32
    %c0_i32_1 = arith.constant 0 : i32
    return %c0_i32, %c0_i32_0 : i32, i32
  }
  func.func @transform_10(%arg0: i32) -> (i32, i32) {
    %c0_i32 = arith.constant 0 : i32
    %c0_i32_0 = arith.constant 0 : i32
    %c0_i32_1 = arith.constant 0 : i32
    return %c0_i32, %c0_i32_0 : i32, i32
  }
  func.func @transform_11(%arg0: i32) -> (i32, i32) {
    %c0_i32 = arith.constant 0 : i32
    %c0_i32_0 = arith.constant 0 : i32
    return %arg0, %c0_i32 : i32, i32
  }
}

</mosaic_0001>

<llo_original>
// kernel: tpu_custom_call.1
$region0: #{tpu_custom_call.1}
  #allocation0 [shape = 'u32[]', space=smem, size = 0x4, offset = 0x4, fixed_abs, tag = 'smem constant byte address 0x4 - core index']
  #allocation1 [shape = 'u32[144,128]{1,0:T(1,128)}', space=vmem, size = 0x12000, scoped, tag = 'internal scratch']
  %s0 = inlined_call_operand.hbm [shape: f32[8,32], index: 0, kind: input, shape index: {}]
  %s1 = inlined_call_operand.vmem [shape: f32[32,30], index: 1, kind: input, shape index: {}]
  %s2 = inlined_call_operand.vmem [shape: f32[1,30], index: 2, kind: input, shape index: {}]
  %s3 = inlined_call_operand.hbm [shape: f32[30,30], index: 3, kind: input, shape index: {}]
  %s4 = inlined_call_operand.vmem [shape: f32[1,30], index: 4, kind: input, shape index: {}]
  %s5 = inlined_call_operand.hbm [shape: f32[30,30], index: 5, kind: input, shape index: {}]
  %s6 = inlined_call_operand.vmem [shape: f32[1,30], index: 6, kind: input, shape index: {}]
  %s7 = inlined_call_operand.hbm [shape: f32[30,30], index: 7, kind: input, shape index: {}]
  %s8 = inlined_call_operand.vmem [shape: f32[1,30], index: 8, kind: input, shape index: {}]
  %s9 = inlined_call_operand.vmem [shape: f32[30,2], index: 9, kind: input, shape index: {}]
  %s10 = inlined_call_operand.vmem [shape: f32[1,2], index: 10, kind: input, shape index: {}]
  %s11 = inlined_call_operand.vmem [shape: f32[8,2], index: 11, kind: output, shape index: {}]
  %s12 = sld [smem:[#allocation0]]
  $region70: #{tpu_custom_call.1} parent=0
    _
  %s14 = ssub.s32 1, %s12
  %s15 = scalar_select 0, %s14, %s12
  $region1: #{tpu_custom_call.1} parent=0
    #allocation2 [shape = 'u8[4096]{0}', space=vmem, size = 0x1000, scoped, tag = 'input window, operand 0, single buffered']
    #allocation3 [shape = 's32[1]{0}', space=sflag, size = 0x4, scoped, tag = 'scoped memory for tpu_custom_call.1']
    #allocation4 [shape = 'u8[16384]{0}', space=vmem, size = 0x4000, scoped, tag = 'input window, operand 3, single buffered']
    #allocation5 [shape = 's32[1]{0}', space=sflag, size = 0x4, scoped, tag = 'scoped memory for tpu_custom_call.1']
    #allocation6 [shape = 'u8[16384]{0}', space=vmem, size = 0x4000, scoped, tag = 'input window, operand 5, single buffered']
    #allocation7 [shape = 'u8[16384]{0}', space=vmem, size = 0x4000, scoped, tag = 'input window, operand 7, single buffered']
    #allocation8 [shape = 's32[1]{0}', space=sflag, size = 0x4, scoped, tag = 'scoped memory for tpu_custom_call.1']
    %16 = vsyncpa [#allocation3], 0
    %17 = vsyncpa [#allocation5], 0
    %18 = vsyncpa [#allocation8], 0
    // Predicated region
    $region2: #{tpu_custom_call.1} parent=1 // pred_check
      _
    $region3: #{tpu_custom_call.1} parent=1 // pred_check_branch
      %20 = sbr.rel (0) target = $region5
    $region4: #{tpu_custom_call.1} parent=1 // pred_region
      %s22 = ssub.s32 128, 128
      %23 = vsyncadd [#allocation3], %s22
      %s25 = sshll.u32 [#allocation2], 4
      %s26 = int_to_ptr.vmem [resolvable:$true] %s25
      %28 = dma.hbm_to_vmem [thread:$0]  %s0, 128, %s26, [#allocation3]
    $region5: #{tpu_custom_call.1} parent=1 // pred_fallthru
      _
    // Predicated region
    $region6: #{tpu_custom_call.1} parent=1 // pred_check
      _
    $region7: #{tpu_custom_call.1} parent=1 // pred_check_branch
      %30 = sbr.rel (0) target = $region9
    $region8: #{tpu_custom_call.1} parent=1 // pred_region
      _
    $region9: #{tpu_custom_call.1} parent=1 // pred_fallthru
      _
    // Predicated region
    $region10: #{tpu_custom_call.1} parent=1 // pred_check
      _
    $region11: #{tpu_custom_call.1} parent=1 // pred_check_branch
      %32 = sbr.rel (0) target = $region13
    $region12: #{tpu_custom_call.1} parent=1 // pred_region
      _
    $region13: #{tpu_custom_call.1} parent=1 // pred_fallthru
      _
    // Predicated region
    $region14: #{tpu_custom_call.1} parent=1 // pred_check
      _
    $region15: #{tpu_custom_call.1} parent=1 // pred_check_branch
      %34 = sbr.rel (0) target = $region17
    $region16: #{tpu_custom_call.1} parent=1 // pred_region
      %s36 = ssub.s32 512, 512
      %37 = vsyncadd [#allocation5], %s36
      %s38 = sshll.u32 [#allocation4], 4
      %s39 = int_to_ptr.vmem [resolvable:$true] %s38
      %44 = dma.hbm_to_vmem [thread:$0]  %s3, 512, %s39, [#allocation5], 128, 128, 8
    $region17: #{tpu_custom_call.1} parent=1 // pred_fallthru
      _
    // Predicated region
    $region18: #{tpu_custom_call.1} parent=1 // pred_check
      _
    $region19: #{tpu_custom_call.1} parent=1 // pred_check_branch
      %46 = sbr.rel (0) target = $region21
    $region20: #{tpu_custom_call.1} parent=1 // pred_region
      _
    $region21: #{tpu_custom_call.1} parent=1 // pred_fallthru
      _
    // Predicated region
    $region22: #{tpu_custom_call.1} parent=1 // pred_check
      _
    $region23: #{tpu_custom_call.1} parent=1 // pred_check_branch
      %48 = sbr.rel (0) target = $region25
    $region24: #{tpu_custom_call.1} parent=1 // pred_region
      %s50 = ssub.s32 512, 512
      %51 = vsyncadd [#allocation5], %s50
      %s52 = sshll.u32 [#allocation6], 4
      %s53 = int_to_ptr.vmem [resolvable:$true] %s52
      %58 = dma.hbm_to_vmem [thread:$0]  %s5, 512, %s53, [#allocation5], 128, 128, 8
    $region25: #{tpu_custom_call.1} parent=1 // pred_fallthru
      _
    // Predicated region
    $region26: #{tpu_custom_call.1} parent=1 // pred_check
      _
    $region27: #{tpu_custom_call.1} parent=1 // pred_check_branch
      %60 = sbr.rel (0) target = $region29
    $region28: #{tpu_custom_call.1} parent=1 // pred_region
      _
    $region29: #{tpu_custom_call.1} parent=1 // pred_fallthru
      _
    // Predicated region
    $region30: #{tpu_custom_call.1} parent=1 // pred_check
      _
    $region31: #{tpu_custom_call.1} parent=1 // pred_check_branch
      %62 = sbr.rel (0) target = $region33
    $region32: #{tpu_custom_call.1} parent=1 // pred_region
      %s64 = ssub.s32 512, 512
      %65 = vsyncadd [#allocation8], %s64
      %s66 = sshll.u32 [#allocation7], 4
      %s67 = int_to_ptr.vmem [resolvable:$true] %s66
      %72 = dma.hbm_to_vmem [thread:$0]  %s7, 512, %s67, [#allocation8], 128, 128, 8
    $region33: #{tpu_custom_call.1} parent=1 // pred_fallthru
      _
    // Predicated region
    $region34: #{tpu_custom_call.1} parent=1 // pred_check
      _
    $region35: #{tpu_custom_call.1} parent=1 // pred_check_branch
      %74 = sbr.rel (0) target = $region37
    $region36: #{tpu_custom_call.1} parent=1 // pred_region
      _
    $region37: #{tpu_custom_call.1} parent=1 // pred_fallthru
      _
    // Predicated region
    $region38: #{tpu_custom_call.1} parent=1 // pred_check
      _
    $region39: #{tpu_custom_call.1} parent=1 // pred_check_branch
      %76 = sbr.rel (0) target = $region41
    $region40: #{tpu_custom_call.1} parent=1 // pred_region
      _
    $region41: #{tpu_custom_call.1} parent=1 // pred_fallthru
      _
    // Predicated region
    $region42: #{tpu_custom_call.1} parent=1 // pred_check
      _
    $region43: #{tpu_custom_call.1} parent=1 // pred_check_branch
      %78 = sbr.rel (0) target = $region45
    $region44: #{tpu_custom_call.1} parent=1 // pred_region
      _
    $region45: #{tpu_custom_call.1} parent=1 // pred_fallthru
      _
    // Predicated region
    $region46: #{tpu_custom_call.1} parent=1 // pred_check
      _
    $region47: #{tpu_custom_call.1} parent=1 // pred_check_branch
      %80 = sbr.rel (0) target = $region49
    $region48: #{tpu_custom_call.1} parent=1 // pred_region
      %81 = dma.done [#allocation3], 128
    $region49: #{tpu_custom_call.1} parent=1 // pred_fallthru
      _
    // Predicated region
    $region50: #{tpu_custom_call.1} parent=1 // pred_check
      _
    $region51: #{tpu_custom_call.1} parent=1 // pred_check_branch
      %83 = sbr.rel (0) target = $region53
    $region52: #{tpu_custom_call.1} parent=1 // pred_region
      %84 = dma.done [#allocation5], 512
    $region53: #{tpu_custom_call.1} parent=1 // pred_fallthru
      _
    // Predicated region
    $region54: #{tpu_custom_call.1} parent=1 // pred_check
      _
    $region55: #{tpu_custom_call.1} parent=1 // pred_check_branch
      %86 = sbr.rel (0) target = $region57
    $region56: #{tpu_custom_call.1} parent=1 // pred_region
      %87 = dma.done [#allocation5], 512
    $region57: #{tpu_custom_call.1} parent=1 // pred_fallthru
      _
    // Predicated region
    $region58: #{tpu_custom_call.1} parent=1 // pred_check
      _
    $region59: #{tpu_custom_call.1} parent=1 // pred_check_branch
      %89 = sbr.rel (0) target = $region61
    $region60: #{tpu_custom_call.1} parent=1 // pred_region
      %90 = dma.done [#allocation8], 512
    $region61: #{tpu_custom_call.1} parent=1 // pred_fallthru
      _
    %v92 = vld [vmem:[#allocation2] sm:$0xff]
    %v93 = vpack.c.bf16 %v92, %v92
    %v94 = vld [vmem:[%s1] sm:$0xff]
    %v95 = vld [vmem:[%s1 + $0x8] sm:$0xff]
    %v96 = vld [vmem:[%s1 + $0x10] sm:$0xff]
    %v97 = vld [vmem:[%s1 + $0x18] sm:$0xff]
    %v98 = vpack.c.bf16 %v95, %v94
    %v99 = vpack.c.bf16 %v97, %v96
    %v100 = vld [vmem:[%s2] sm:$0x1]
    %v102 = vlaneseq
    %v103 = vshrl.u32 %v102, 7
    %v104 = vsub.s32 0, %v103
    %v105 = vrot.slane %v100, %v104
    %vm107 = vcmask 261120
    %v109 = vsel %vm107, %v93, 0
    %111 = vmatprep.subr.bf16.mxu0 0
    %112 = vmatpush1.bf16.msra.mxu0 0
    %113 = vmatprep.subr.bf16.mxu0 0
    %114 = vmatpush1.bf16.msra.mxu0 0
    %115 = vmatprep.subr.bf16.mxu0 0
    %116 = vmatpush1.bf16.msra.mxu0 0
    %117 = vmatprep.subr.bf16.mxu0 0
    %118 = vmatpush1.bf16.msra.mxu0 0
    %119 = vmatprep.subr.bf16.mxu0 0
    %120 = vmatpush1.bf16.msra.mxu0 0
    %121 = vmatprep.subr.bf16.mxu0 0
    %122 = vmatpush1.bf16.msra.mxu0 0
    %123 = vmatprep.subr.bf16.mxu0 0
    %124 = vmatpush1.bf16.msra.mxu0 %v99
    %125 = vmatprep.subr.bf16.mxu0 0
    %126 = vmatpush1.bf16.msra.mxu0 %v98
    %127 = vmatprep.subr.bf16.mxu0 0
    %128 = vmatpush2.bf16.msra.mxu0 0
    %129 = vmatprep.subr.bf16.mxu0 0
    %130 = vmatpush2.bf16.msra.mxu0 0
    %131 = vmatprep.subr.bf16.mxu0 0
    %132 = vmatpush2.bf16.msra.mxu0 0
    %133 = vmatprep.subr.bf16.mxu0 0
    %134 = vmatpush2.bf16.msra.mxu0 0
    %135 = vmatprep.subr.bf16.mxu0 0
    %136 = vmatpush2.bf16.msra.mxu0 0
    %137 = vmatprep.subr.bf16.mxu0 0
    %138 = vmatpush2.bf16.msra.mxu0 0
    %139 = vmatprep.subr.bf16.mxu0 0
    %140 = vmatpush2.bf16.msra.mxu0 0
    %141 = vmatprep.subr.bf16.mxu0 0
    %142 = vmatpush2.bf16.msra.mxu0 0
    %143 = vmatprep.mubr.bf16.mxu0 0
    %144 = vmatmul.mubr.bf16.gmra.mxu0 %v109
    %v145 = vpop.f32.mrf.mxu0
    %v146 = vadd.f32 %v105, %v145
    %v147 = vpop.f32.mrf.mxu0
    %v148 = vpop.f32.mrf.mxu0
    %v149 = vpop.f32.mrf.mxu0
    %150 = vdwg.mxu0
    %v151 = vmax.f32 %v146, 0.0
    %v152 = vpack.c.bf16 %v151, %v151
    %v153 = vld [vmem:[#allocation4] sm:$0xff]
    %v154 = vld [vmem:[#allocation4 + $0x8] sm:$0xff]
    %v155 = vld [vmem:[#allocation4 + $0x10] sm:$0xff]
    %v156 = vld [vmem:[#allocation4 + $0x18] sm:$0x3f]
    %v157 = vpack.c.bf16 %v154, %v153
    %v158 = vpack.c.bf16 %v156, %v155
    %v159 = vld [vmem:[%s4] sm:$0x1]
    %v161 = vlaneseq
    %v162 = vshrl.u32 %v161, 7
    %v163 = vsub.s32 0, %v162
    %v164 = vrot.slane %v159, %v163
    %vm166 = vcmask 244736
    %v168 = vsel %vm166, %v152, 0
    %vm170 = vcmask 1046528
    %v172 = vsel %vm170, %v158, 0
    %174 = vmatprep.subr.bf16.mxu0 0
    %175 = vmatpush1.bf16.msra.mxu0 0
    %176 = vmatprep.subr.bf16.mxu0 0
    %177 = vmatpush1.bf16.msra.mxu0 0
    %178 = vmatprep.subr.bf16.mxu0 0
    %179 = vmatpush1.bf16.msra.mxu0 0
    %180 = vmatprep.subr.bf16.mxu0 0
    %181 = vmatpush1.bf16.msra.mxu0 0
    %182 = vmatprep.subr.bf16.mxu0 0
    %183 = vmatpush1.bf16.msra.mxu0 0
    %184 = vmatprep.subr.bf16.mxu0 0
    %185 = vmatpush1.bf16.msra.mxu0 0
    %186 = vmatprep.subr.bf16.mxu0 0
    %187 = vmatpush1.bf16.msra.mxu0 %v172
    %188 = vmatprep.subr.bf16.mxu0 0
    %189 = vmatpush1.bf16.msra.mxu0 %v157
    %190 = vmatprep.subr.bf16.mxu0 0
    %191 = vmatpush2.bf16.msra.mxu0 0
    %192 = vmatprep.subr.bf16.mxu0 0
    %193 = vmatpush2.bf16.msra.mxu0 0
    %194 = vmatprep.subr.bf16.mxu0 0
    %195 = vmatpush2.bf16.msra.mxu0 0
    %196 = vmatprep.subr.bf16.mxu0 0
    %197 = vmatpush2.bf16.msra.mxu0 0
    %198 = vmatprep.subr.bf16.mxu0 0
    %199 = vmatpush2.bf16.msra.mxu0 0
    %200 = vmatprep.subr.bf16.mxu0 0
    %201 = vmatpush2.bf16.msra.mxu0 0
    %202 = vmatprep.subr.bf16.mxu0 0
    %203 = vmatpush2.bf16.msra.mxu0 0
    %204 = vmatprep.subr.bf16.mxu0 0
    %205 = vmatpush2.bf16.msra.mxu0 0
    %206 = vmatprep.mubr.bf16.mxu0 0
    %207 = vmatmul.mubr.bf16.gmra.mxu0 %v168
    %v208 = vpop.f32.mrf.mxu0
    %v209 = vadd.f32 %v164, %v208
    %v210 = vpop.f32.mrf.mxu0
    %v211 = vpop.f32.mrf.mxu0
    %v212 = vpop.f32.mrf.mxu0
    %213 = vdwg.mxu0
    %v214 = vmax.f32 %v209, 0.0
    %v215 = vpack.c.bf16 %v214, %v214
    %v216 = vld [vmem:[#allocation6] sm:$0xff]
    %v217 = vld [vmem:[#allocation6 + $0x8] sm:$0xff]
    %v218 = vld [vmem:[#allocation6 + $0x10] sm:$0xff]
    %v219 = vld [vmem:[#allocation6 + $0x18] sm:$0x3f]
    %v220 = vpack.c.bf16 %v217, %v216
    %v221 = vpack.c.bf16 %v219, %v218
    %v222 = vld [vmem:[%s6] sm:$0x1]
    %v224 = vlaneseq
    %v225 = vshrl.u32 %v224, 7
    %v226 = vsub.s32 0, %v225
    %v227 = vrot.slane %v222, %v226
    %v230 = vsel %vm166, %v215, 0
    %v233 = vsel %vm170, %v221, 0
    %235 = vmatprep.subr.bf16.mxu0 0
    %236 = vmatpush1.bf16.msra.mxu0 0
    %237 = vmatprep.subr.bf16.mxu0 0
    %238 = vmatpush1.bf16.msra.mxu0 0
    %239 = vmatprep.subr.bf16.mxu0 0
    %240 = vmatpush1.bf16.msra.mxu0 0
    %241 = vmatprep.subr.bf16.mxu0 0
    %242 = vmatpush1.bf16.msra.mxu0 0
    %243 = vmatprep.subr.bf16.mxu0 0
    %244 = vmatpush1.bf16.msra.mxu0 0
    %245 = vmatprep.subr.bf16.mxu0 0
    %246 = vmatpush1.bf16.msra.mxu0 0
    %247 = vmatprep.subr.bf16.mxu0 0
    %248 = vmatpush1.bf16.msra.mxu0 %v233
    %249 = vmatprep.subr.bf16.mxu0 0
    %250 = vmatpush1.bf16.msra.mxu0 %v220
    %251 = vmatprep.subr.bf16.mxu0 0
    %252 = vmatpush2.bf16.msra.mxu0 0
    %253 = vmatprep.subr.bf16.mxu0 0
    %254 = vmatpush2.bf16.msra.mxu0 0
    %255 = vmatprep.subr.bf16.mxu0 0
    %256 = vmatpush2.bf16.msra.mxu0 0
    %257 = vmatprep.subr.bf16.mxu0 0
    %258 = vmatpush2.bf16.msra.mxu0 0
    %259 = vmatprep.subr.bf16.mxu0 0
    %260 = vmatpush2.bf16.msra.mxu0 0
    %261 = vmatprep.subr.bf16.mxu0 0
    %262 = vmatpush2.bf16.msra.mxu0 0
    %263 = vmatprep.subr.bf16.mxu0 0
    %264 = vmatpush2.bf16.msra.mxu0 0
    %265 = vmatprep.subr.bf16.mxu0 0
    %266 = vmatpush2.bf16.msra.mxu0 0
    %267 = vmatprep.mubr.bf16.mxu0 0
    %268 = vmatmul.mubr.bf16.gmra.mxu0 %v230
    %v269 = vpop.f32.mrf.mxu0
    %v270 = vadd.f32 %v227, %v269
    %v271 = vpop.f32.mrf.mxu0
    %v272 = vpop.f32.mrf.mxu0
    %v273 = vpop.f32.mrf.mxu0
    %274 = vdwg.mxu0
    %v275 = vmax.f32 %v270, 0.0
    %v276 = vpack.c.bf16 %v275, %v275
    %v277 = vld [vmem:[#allocation7] sm:$0xff]
    %v278 = vld [vmem:[#allocation7 + $0x8] sm:$0xff]
    %v279 = vld [vmem:[#allocation7 + $0x10] sm:$0xff]
    %v280 = vld [vmem:[#allocation7 + $0x18] sm:$0x3f]
    %v281 = vpack.c.bf16 %v278, %v277
    %v282 = vpack.c.bf16 %v280, %v279
    %v283 = vld [vmem:[%s8] sm:$0x1]
    %v285 = vlaneseq
    %v286 = vshrl.u32 %v285, 7
    %v287 = vsub.s32 0, %v286
    %v288 = vrot.slane %v283, %v287
    %v291 = vsel %vm166, %v276, 0
    %v294 = vsel %vm170, %v282, 0
    %296 = vmatprep.subr.bf16.mxu0 0
    %297 = vmatpush1.bf16.msra.mxu0 0
    %298 = vmatprep.subr.bf16.mxu0 0
    %299 = vmatpush1.bf16.msra.mxu0 0
    %300 = vmatprep.subr.bf16.mxu0 0
    %301 = vmatpush1.bf16.msra.mxu0 0
    %302 = vmatprep.subr.bf16.mxu0 0
    %303 = vmatpush1.bf16.msra.mxu0 0
    %304 = vmatprep.subr.bf16.mxu0 0
    %305 = vmatpush1.bf16.msra.mxu0 0
    %306 = vmatprep.subr.bf16.mxu0 0
    %307 = vmatpush1.bf16.msra.mxu0 0
    %308 = vmatprep.subr.bf16.mxu0 0
    %309 = vmatpush1.bf16.msra.mxu0 %v294
    %310 = vmatprep.subr.bf16.mxu0 0
    %311 = vmatpush1.bf16.msra.mxu0 %v281
    %312 = vmatprep.subr.bf16.mxu0 0
    %313 = vmatpush2.bf16.msra.mxu0 0
    %314 = vmatprep.subr.bf16.mxu0 0
    %315 = vmatpush2.bf16.msra.mxu0 0
    %316 = vmatprep.subr.bf16.mxu0 0
    %317 = vmatpush2.bf16.msra.mxu0 0
    %318 = vmatprep.subr.bf16.mxu0 0
    %319 = vmatpush2.bf16.msra.mxu0 0
    %320 = vmatprep.subr.bf16.mxu0 0
    %321 = vmatpush2.bf16.msra.mxu0 0
    %322 = vmatprep.subr.bf16.mxu0 0
    %323 = vmatpush2.bf16.msra.mxu0 0
    %324 = vmatprep.subr.bf16.mxu0 0
    %325 = vmatpush2.bf16.msra.mxu0 0
    %326 = vmatprep.subr.bf16.mxu0 0
    %327 = vmatpush2.bf16.msra.mxu0 0
    %328 = vmatprep.mubr.bf16.mxu0 0
    %329 = vmatmul.mubr.bf16.gmra.mxu0 %v291
    %v330 = vpop.f32.mrf.mxu0
    %v331 = vadd.f32 %v288, %v330
    %v332 = vpop.f32.mrf.mxu0
    %v333 = vpop.f32.mrf.mxu0
    %v334 = vpop.f32.mrf.mxu0
    %335 = vdwg.mxu0
    %v336 = vmax.f32 %v331, 0.0
    %v337 = vpack.c.bf16 %v336, %v336
    %v338 = vld [vmem:[%s9] sm:$0xff]
    %v339 = vld [vmem:[%s9 + $0x8] sm:$0xff]
    %v340 = vld [vmem:[%s9 + $0x10] sm:$0xff]
    %v341 = vld [vmem:[%s9 + $0x18] sm:$0x3f]
    %v342 = vpack.c.bf16 %v339, %v338
    %v343 = vpack.c.bf16 %v341, %v340
    %v344 = vld [vmem:[%s10] sm:$0x1]
    %v346 = vlaneseq
    %v347 = vshrl.u32 %v346, 7
    %v348 = vsub.s32 0, %v347
    %v349 = vrot.slane %v344, %v348
    %v352 = vsel %vm166, %v337, 0
    %v355 = vsel %vm170, %v343, 0
    %357 = vmatprep.subr.bf16.mxu0 0
    %358 = vmatpush1.bf16.msra.mxu0 0
    %359 = vmatprep.subr.bf16.mxu0 0
    %360 = vmatpush1.bf16.msra.mxu0 0
    %361 = vmatprep.subr.bf16.mxu0 0
    %362 = vmatpush1.bf16.msra.mxu0 0
    %363 = vmatprep.subr.bf16.mxu0 0
    %364 = vmatpush1.bf16.msra.mxu0 0
    %365 = vmatprep.subr.bf16.mxu0 0
    %366 = vmatpush1.bf16.msra.mxu0 0
    %367 = vmatprep.subr.bf16.mxu0 0
    %368 = vmatpush1.bf16.msra.mxu0 0
    %369 = vmatprep.subr.bf16.mxu0 0
    %370 = vmatpush1.bf16.msra.mxu0 %v355
    %371 = vmatprep.subr.bf16.mxu0 0
    %372 = vmatpush1.bf16.msra.mxu0 %v342
    %373 = vmatprep.subr.bf16.mxu0 0
    %374 = vmatpush2.bf16.msra.mxu0 0
    %375 = vmatprep.subr.bf16.mxu0 0
    %376 = vmatpush2.bf16.msra.mxu0 0
    %377 = vmatprep.subr.bf16.mxu0 0
    %378 = vmatpush2.bf16.msra.mxu0 0
    %379 = vmatprep.subr.bf16.mxu0 0
    %380 = vmatpush2.bf16.msra.mxu0 0
    %381 = vmatprep.subr.bf16.mxu0 0
    %382 = vmatpush2.bf16.msra.mxu0 0
    %383 = vmatprep.subr.bf16.mxu0 0
    %384 = vmatpush2.bf16.msra.mxu0 0
    %385 = vmatprep.subr.bf16.mxu0 0
    %386 = vmatpush2.bf16.msra.mxu0 0
    %387 = vmatprep.subr.bf16.mxu0 0
    %388 = vmatpush2.bf16.msra.mxu0 0
    %389 = vmatprep.mubr.bf16.mxu0 0
    %390 = vmatmul.mubr.bf16.gmra.mxu0 %v352
    %v391 = vpop.f32.mrf.mxu0
    %v392 = vadd.f32 %v349, %v391
    %v393 = vpop.f32.mrf.mxu0
    %v394 = vpop.f32.mrf.mxu0
    %v395 = vpop.f32.mrf.mxu0
    %396 = vdwg.mxu0
    %vm397 = vcmask 15360
    %398 = vst.msk [vmem:[%s11] sm:$0xff] %vm397, %v392
    // Predicated region
    $region62: #{tpu_custom_call.1} parent=1 // pred_check
      _
    $region63: #{tpu_custom_call.1} parent=1 // pred_check_branch
      %400 = sbr.rel (0) target = $region65
    $region64: #{tpu_custom_call.1} parent=1 // pred_region
      _
    $region65: #{tpu_custom_call.1} parent=1 // pred_fallthru
      _
    // Predicated region
    $region66: #{tpu_custom_call.1} parent=1 // pred_check
      _
    $region67: #{tpu_custom_call.1} parent=1 // pred_check_branch
      %402 = sbr.rel (0) target = $region69
    $region68: #{tpu_custom_call.1} parent=1 // pred_region
      _
    $region69: #{tpu_custom_call.1} parent=1 // pred_fallthru
      _
    %403 = vsyncpa [#allocation3], 1
    %404 = vsyncpa [#allocation5], 1
    %405 = vsyncpa [#allocation8], 1

</llo_original>
